<compile_context>
chip_gen: v7x
topology: tpu7x:2x2x1
jax: 0.10.0
libtpu: 0.0.40
codegen_flags: <defaults>
</compile_context>

<pallas_src>
import jax
import jax.numpy as jnp
from jax.experimental import pallas as pl
from jax.experimental.pallas import tpu as pltpu


def _round_up(x, m):
    return ((x + m - 1) // m) * m


def _cdiv(a, b):
    return -(-a // b)


# ----------------------------------------------------------------------------- kernel
def resnet_stack_kernel(x_ref, w1_ref, b1_ref, w2_ref, b2_ref, o_ref):
    """One grid step: push a (tb, Pp) tile of packed activations through all L blocks.

    x_ref:          (tb, Pp)      f32 packed activations
    w1_ref, w2_ref: (L, Pp, Pp)   block-diagonal weights (in, out), bf16 (or f32)
    b1_ref, b2_ref: (L, 1, Pp)    f32 biases (0.3 residual scale folded into b2/w2)
    """
    x = x_ref[...]                       # f32
    num_blocks = w1_ref.shape[0]
    mxu_dtype = w1_ref.dtype
    for l in range(num_blocks):          # static unroll; activations stay in vregs/VMEM
        h = jnp.maximum(x, 0.0)
        h = jnp.dot(h.astype(mxu_dtype), w1_ref[l],
                    preferred_element_type=jnp.float32) + b1_ref[l]
        h = jnp.maximum(h, 0.0)
        h = jnp.dot(h.astype(mxu_dtype), w2_ref[l],
                    preferred_element_type=jnp.float32) + b2_ref[l]
        x = x + h                        # residual (0.3 scale already folded into w2/b2)
    o_ref[...] = x


# ----------------------------------------------------------------------------- param prep
def prepare_resnet_params(w1_list, b1_list, w2_list, b2_list,
                          matmul_dtype=jnp.bfloat16):
    """One-time parameter prep (hoisted out of the per-call path).

    Takes per-block PyTorch-convention weights (out, in) and biases (out,), transposes to
    (in, out), builds block-diagonal kron(I_g, W^T) matrices with g = 128 // D so packed
    activations of width g*D are lane-dense, tiles the biases g times, and folds the 0.3
    residual scale into W2/b2.  Weights are stored in `matmul_dtype` (bf16 by default) for
    the MXU; biases stay f32.
    """
    D = int(jnp.asarray(w1_list[0]).shape[0])
    g = max(1, 128 // D)                 # feature-packing factor
    P = g * D                            # packed feature width
    Pp = _round_up(P, 128)               # lane-aligned width (== P for D = 16/32)

    eye_g = jnp.eye(g, dtype=jnp.float32)

    def prep_w(w, scale):
        wt = jnp.asarray(w, jnp.float32).T * scale           # (in, out)
        blk = jnp.kron(eye_g, wt)                            # (g*D, g*D) block-diagonal
        blk = jnp.pad(blk, ((0, Pp - P), (0, Pp - P)))
        return blk.astype(matmul_dtype)

    def prep_b(b, scale):
        bt = jnp.tile(jnp.asarray(b, jnp.float32) * scale, g)
        return jnp.pad(bt, (0, Pp - P)).reshape(1, Pp)

    w1s = jnp.stack([prep_w(w, 1.0) for w in w1_list])
    b1s = jnp.stack([prep_b(b, 1.0) for b in b1_list])
    w2s = jnp.stack([prep_w(w, 0.3) for w in w2_list])        # fold residual scale (weight)
    b2s = jnp.stack([prep_b(b, 0.3) for b in b2_list])        # fold residual scale (bias)
    return dict(w1=w1s, b1=b1s, w2=w2s, b2=b2s, dim=D, g=g, packed=P, packed_pad=Pp)


# ----------------------------------------------------------------------------- forward
def resnet_stack_forward(x, params, *, tile_b=1024, min_rows_for_core_split=512):
    """x: (B, D) -> (B, D) f32.  params: output of prepare_resnet_params."""
    w1s, b1s, w2s, b2s = params["w1"], params["b1"], params["w2"], params["b2"]
    D, g, P, Pp = params["dim"], params["g"], params["packed"], params["packed_pad"]
    L = w1s.shape[0]

    x = jnp.asarray(x, jnp.float32)
    B = x.shape[0]
    assert x.shape[1] == D

    # --- feature packing: (B, D) -> (R, g*D); pack/unpack reshapes are metadata-only ---
    Bg = _round_up(B, g)
    if Bg != B:                                   # tiny (< g rows) pad only when needed
        x = jnp.pad(x, ((0, Bg - B), (0, 0)))
    R = Bg // g
    x_p = x.reshape(R, P)
    if Pp != P:                                   # never taken for D = 16 / 32
        x_p = jnp.pad(x_p, ((0, 0), (0, Pp - P)))

    # --- row (batch) tiling ---
    tile_b = max(8, _round_up(tile_b, 8))
    if R <= tile_b:
        if R >= min_rows_for_core_split:
            # Only worth splitting the "parallel" axis across 2 TensorCores (v7x) when
            # each half still has plenty of rows; 1-TC chips / tiny batches take 1 step.
            tb = _round_up(_cdiv(R, 2), 8)
        else:
            tb = R                                # single full-extent tile
    else:
        tb = tile_b
    grid_n = _cdiv(R, tb)                         # partial last tile handled by masking

    def resident(shape):
        # Constant index_map: block is identical every grid step -> Pallas keeps it
        # resident in VMEM and elides the re-DMA.
        return pl.BlockSpec(shape, lambda i: (0, 0, 0))

    out_p = pl.pallas_call(
        resnet_stack_kernel,
        out_shape=jax.ShapeDtypeStruct((R, Pp), jnp.float32),
        grid_spec=pltpu.PrefetchScalarGridSpec(
            num_scalar_prefetch=0,
            grid=(grid_n,),
            in_specs=[
                pl.BlockSpec((tb, Pp), lambda i: (i, 0)),   # packed activations (pipelined)
                resident((L, Pp, Pp)),                      # W1 (block-diag) stack
                resident((L, 1, Pp)),                       # b1 stack
                resident((L, Pp, Pp)),                      # W2 (block-diag, *0.3) stack
                resident((L, 1, Pp)),                       # b2 (*0.3) stack
            ],
            out_specs=pl.BlockSpec((tb, Pp), lambda i: (i, 0)),
        ),
        compiler_params=pltpu.CompilerParams(
            dimension_semantics=("parallel",),
        ),
    )(x_p, w1s, b1s, w2s, b2s)

    # --- unpack: metadata reshape (+ slice only if B % g != 0) ---
    out = out_p if Pp == P else out_p[:, :P]
    out = out.reshape(Bg, D)
    return out if Bg == B else out[:B]


# ----------------------------------------------------------------------------- reference
def resnet_stack_reference(x, w1_list, b1_list, w2_list, b2_list):
    """Pure-JAX f32 reference matching the PyTorch module (Dropout in eval mode)."""
    x = jnp.asarray(x, jnp.float32)
    for w1, b1, w2, b2 in zip(w1_list, b1_list, w2_list, b2_list):
        h = jnp.maximum(x, 0.0) @ jnp.asarray(w1, jnp.float32).T + jnp.asarray(b1, jnp.float32)
        h = jnp.maximum(h, 0.0) @ jnp.asarray(w2, jnp.float32).T + jnp.asarray(b2, jnp.float32)
        x = x + 0.3 * h
    return x


# ----------------------------------------------------------------------------- demo / test
if __name__ == "__main__":
    key = jax.random.PRNGKey(0)

    def make_params(k, DIM, L):
        bound = 1.0 / (DIM ** 0.5)  # mimics nn.Linear uniform init
        w1, b1, w2, b2 = [], [], [], []
        keys = jax.random.split(k, 4 * L)
        for l in range(L):
            k1, k2, k3, k4 = keys[4 * l: 4 * l + 4]
            w1.append(jax.random.uniform(k1, (DIM, DIM), jnp.float32, -bound, bound))
            b1.append(jax.random.uniform(k2, (DIM,), jnp.float32, -bound, bound))
            w2.append(jax.random.uniform(k3, (DIM, DIM), jnp.float32, -bound, bound))
            b2.append(jax.random.uniform(k4, (DIM,), jnp.float32, -bound, bound))
        return w1, b1, w2, b2

    def check(out, ref, atol, rtol):
        err = float(jnp.max(jnp.abs(out - ref)))
        assert out.shape == ref.shape
        assert jnp.allclose(out, ref, atol=atol, rtol=rtol), err

    # Case 1: fc1/fc2/fc3 stacks in MyModel -> two fused ResNet(16) blocks, B=64 (bf16 MXU).
    DIM, L, B = 16, 2, 64
    kx, kp, key = jax.random.split(key, 3)
    x = jax.random.normal(kx, (B, DIM), dtype=jnp.float32)
    params = make_params(kp, DIM, L)
    packed = prepare_resnet_params(*params)                       # one-time prep
    out = jax.block_until_ready(resnet_stack_forward(x, packed))
    check(out, resnet_stack_reference(x, *params), atol=2e-2, rtol=2e-2)

    # Case 2: ODE ResNet(hidden_dim=32) -> single block, tiny batch (grid of 1), bf16 MXU.
    DIM, L, B = 32, 1, 8
    kx, kp, key = jax.random.split(key, 3)
    x = jax.random.normal(kx, (B, DIM), dtype=jnp.float32)
    params = make_params(kp, DIM, L)
    packed = prepare_resnet_params(*params)
    out = jax.block_until_ready(resnet_stack_forward(x, packed))
    check(out, resnet_stack_reference(x, *params), atol=2e-2, rtol=2e-2)

    # Case 2b: same block with f32 MXU operands -> tight tolerance (validates packing math).
    packed_f32 = prepare_resnet_params(*params, matmul_dtype=jnp.float32)
    out = jax.block_until_ready(resnet_stack_forward(x, packed_f32))
    check(out, resnet_stack_reference(x, *params), atol=1e-4, rtol=1e-4)

    # Case 3: batch not divisible by the packing factor (B=13, g=8) -> pad-and-slice path.
    DIM, L, B = 16, 2, 13
    kx, kp = jax.random.split(key, 2)
    x = jax.random.normal(kx, (B, DIM), dtype=jnp.float32)
    params = make_params(kp, DIM, L)
    packed = prepare_resnet_params(*params)
    out = jax.block_until_ready(resnet_stack_forward(x, packed))
    check(out, resnet_stack_reference(x, *params), atol=2e-2, rtol=2e-2)

    print("KERNEL_OK")
</pallas_src>

<mosaic_0001>
module attributes {stable_mosaic.version = 11 : i64} {
  func.func @resnet_stack_kernel(%arg0: i32, %arg1: memref<8x128xf32, #tpu.memory_space<vmem>>, %arg2: memref<2x128x128xbf16, #tpu.memory_space<vmem>>, %arg3: memref<2x1x128xf32, #tpu.memory_space<vmem>>, %arg4: memref<2x128x128xbf16, #tpu.memory_space<vmem>>, %arg5: memref<2x1x128xf32, #tpu.memory_space<vmem>>, %arg6: memref<8x128xf32, #tpu.memory_space<vmem>>) attributes {dimension_semantics = [#tpu.dimension_semantics<parallel>], iteration_bounds = array<i64: 1>, scalar_prefetch = 0 : i64, scratch_operands = 0 : i64, tpu.core_type = #tpu.core_type<tc>, window_params = [{transform_indices = @transform_0, window_bounds = array<i64: 8, 128>}, {pipeline_mode = #tpu.pipeline_mode<synchronous>, transform_indices = @transform_1, window_bounds = array<i64: 2, 128, 128>}, {pipeline_mode = #tpu.pipeline_mode<synchronous>, transform_indices = @transform_2, window_bounds = array<i64: 2, 1, 128>}, {pipeline_mode = #tpu.pipeline_mode<synchronous>, transform_indices = @transform_3, window_bounds = array<i64: 2, 128, 128>}, {pipeline_mode = #tpu.pipeline_mode<synchronous>, transform_indices = @transform_4, window_bounds = array<i64: 2, 1, 128>}, {transform_indices = @transform_5, window_bounds = array<i64: 8, 128>}]} {
    %c0 = arith.constant 0 : index
    %c0_0 = arith.constant 0 : index
    %0 = vector.load %arg1[%c0, %c0_0] : memref<8x128xf32, #tpu.memory_space<vmem>>, vector<8x128xf32>
    %cst = arith.constant 0.000000e+00 : f32
    %1 = vector.broadcast %cst : f32 to vector<8x128xf32>
    %2 = arith.maximumf %0, %1 : vector<8x128xf32>
    %3 = arith.truncf %2 : vector<8x128xf32> to vector<8x128xbf16>
    %c0_1 = arith.constant 0 : index
    %c0_2 = arith.constant 0 : index
    %c0_3 = arith.constant 0 : index
    %4 = vector.load %arg2[%c0_1, %c0_2, %c0_3] : memref<2x128x128xbf16, #tpu.memory_space<vmem>>, vector<1x128x128xbf16>
    %5 = vector.shape_cast %4 : vector<1x128x128xbf16> to vector<128x128xbf16>
    %cst_4 = arith.constant dense<0.000000e+00> : vector<8x128xf32>
    %6 = tpu.matmul %3, %5, %cst_4 {dimension_numbers = #tpu.dot_dimension_numbers<[1], [0], [0], [1], [0, 0, 1, 1], [], []>} : vector<8x128xbf16>, vector<128x128xbf16>, vector<8x128xf32> -> vector<8x128xf32>
    %c0_5 = arith.constant 0 : index
    %c0_6 = arith.constant 0 : index
    %c0_7 = arith.constant 0 : index
    %7 = vector.load %arg3[%c0_5, %c0_6, %c0_7] : memref<2x1x128xf32, #tpu.memory_space<vmem>>, vector<1x1x128xf32>
    %8 = vector.shape_cast %7 : vector<1x1x128xf32> to vector<1x128xf32>
    %9 = vector.broadcast %8 : vector<1x128xf32> to vector<8x128xf32>
    %10 = arith.addf %6, %9 : vector<8x128xf32>
    %cst_8 = arith.constant 0.000000e+00 : f32
    %11 = vector.broadcast %cst_8 : f32 to vector<8x128xf32>
    %12 = arith.maximumf %10, %11 : vector<8x128xf32>
    %13 = arith.truncf %12 : vector<8x128xf32> to vector<8x128xbf16>
    %c0_9 = arith.constant 0 : index
    %c0_10 = arith.constant 0 : index
    %c0_11 = arith.constant 0 : index
    %14 = vector.load %arg4[%c0_9, %c0_10, %c0_11] : memref<2x128x128xbf16, #tpu.memory_space<vmem>>, vector<1x128x128xbf16>
    %15 = vector.shape_cast %14 : vector<1x128x128xbf16> to vector<128x128xbf16>
    %cst_12 = arith.constant dense<0.000000e+00> : vector<8x128xf32>
    %16 = tpu.matmul %13, %15, %cst_12 {dimension_numbers = #tpu.dot_dimension_numbers<[1], [0], [0], [1], [0, 0, 1, 1], [], []>} : vector<8x128xbf16>, vector<128x128xbf16>, vector<8x128xf32> -> vector<8x128xf32>
    %c0_13 = arith.constant 0 : index
    %c0_14 = arith.constant 0 : index
    %c0_15 = arith.constant 0 : index
    %17 = vector.load %arg5[%c0_13, %c0_14, %c0_15] : memref<2x1x128xf32, #tpu.memory_space<vmem>>, vector<1x1x128xf32>
    %18 = vector.shape_cast %17 : vector<1x1x128xf32> to vector<1x128xf32>
    %19 = vector.broadcast %18 : vector<1x128xf32> to vector<8x128xf32>
    %20 = arith.addf %16, %19 : vector<8x128xf32>
    %21 = arith.addf %0, %20 : vector<8x128xf32>
    %cst_16 = arith.constant 0.000000e+00 : f32
    %22 = vector.broadcast %cst_16 : f32 to vector<8x128xf32>
    %23 = arith.maximumf %21, %22 : vector<8x128xf32>
    %24 = arith.truncf %23 : vector<8x128xf32> to vector<8x128xbf16>
    %c1 = arith.constant 1 : index
    %c0_17 = arith.constant 0 : index
    %c0_18 = arith.constant 0 : index
    %25 = vector.load %arg2[%c1, %c0_17, %c0_18] : memref<2x128x128xbf16, #tpu.memory_space<vmem>>, vector<1x128x128xbf16>
    %26 = vector.shape_cast %25 : vector<1x128x128xbf16> to vector<128x128xbf16>
    %cst_19 = arith.constant dense<0.000000e+00> : vector<8x128xf32>
    %27 = tpu.matmul %24, %26, %cst_19 {dimension_numbers = #tpu.dot_dimension_numbers<[1], [0], [0], [1], [0, 0, 1, 1], [], []>} : vector<8x128xbf16>, vector<128x128xbf16>, vector<8x128xf32> -> vector<8x128xf32>
    %c1_20 = arith.constant 1 : index
    %c0_21 = arith.constant 0 : index
    %c0_22 = arith.constant 0 : index
    %28 = vector.load %arg3[%c1_20, %c0_21, %c0_22] : memref<2x1x128xf32, #tpu.memory_space<vmem>>, vector<1x1x128xf32>
    %29 = vector.shape_cast %28 : vector<1x1x128xf32> to vector<1x128xf32>
    %30 = vector.broadcast %29 : vector<1x128xf32> to vector<8x128xf32>
    %31 = arith.addf %27, %30 : vector<8x128xf32>
    %cst_23 = arith.constant 0.000000e+00 : f32
    %32 = vector.broadcast %cst_23 : f32 to vector<8x128xf32>
    %33 = arith.maximumf %31, %32 : vector<8x128xf32>
    %34 = arith.truncf %33 : vector<8x128xf32> to vector<8x128xbf16>
    %c1_24 = arith.constant 1 : index
    %c0_25 = arith.constant 0 : index
    %c0_26 = arith.constant 0 : index
    %35 = vector.load %arg4[%c1_24, %c0_25, %c0_26] : memref<2x128x128xbf16, #tpu.memory_space<vmem>>, vector<1x128x128xbf16>
    %36 = vector.shape_cast %35 : vector<1x128x128xbf16> to vector<128x128xbf16>
    %cst_27 = arith.constant dense<0.000000e+00> : vector<8x128xf32>
    %37 = tpu.matmul %34, %36, %cst_27 {dimension_numbers = #tpu.dot_dimension_numbers<[1], [0], [0], [1], [0, 0, 1, 1], [], []>} : vector<8x128xbf16>, vector<128x128xbf16>, vector<8x128xf32> -> vector<8x128xf32>
    %c1_28 = arith.constant 1 : index
    %c0_29 = arith.constant 0 : index
    %c0_30 = arith.constant 0 : index
    %38 = vector.load %arg5[%c1_28, %c0_29, %c0_30] : memref<2x1x128xf32, #tpu.memory_space<vmem>>, vector<1x1x128xf32>
    %39 = vector.shape_cast %38 : vector<1x1x128xf32> to vector<1x128xf32>
    %40 = vector.broadcast %39 : vector<1x128xf32> to vector<8x128xf32>
    %41 = arith.addf %37, %40 : vector<8x128xf32>
    %42 = arith.addf %21, %41 : vector<8x128xf32>
    %c0_31 = arith.constant 0 : index
    %c0_32 = arith.constant 0 : index
    %43 = vector.load %arg6[%c0_31, %c0_32] : memref<8x128xf32, #tpu.memory_space<vmem>>, vector<8x128xf32>
    tpu.vector_store %arg6[%c0_31, %c0_32], %42 {strides = array<i32>} : memref<8x128xf32, #tpu.memory_space<vmem>>, vector<8x128xf32>,
    return
  }
  func.func @transform_0(%arg0: i32) -> (i32, i32) {
    %c0_i32 = arith.constant 0 : i32
    %c0_i32_0 = arith.constant 0 : i32
    return %arg0, %c0_i32 : i32, i32
  }
  func.func @transform_1(%arg0: i32) -> (i32, i32, i32) {
    %c0_i32 = arith.constant 0 : i32
    %c0_i32_0 = arith.constant 0 : i32
    %c0_i32_1 = arith.constant 0 : i32
    %c0_i32_2 = arith.constant 0 : i32
    return %c0_i32, %c0_i32_0, %c0_i32_1 : i32, i32, i32
  }
  func.func @transform_2(%arg0: i32) -> (i32, i32, i32) {
    %c0_i32 = arith.constant 0 : i32
    %c0_i32_0 = arith.constant 0 : i32
    %c0_i32_1 = arith.constant 0 : i32
    %c0_i32_2 = arith.constant 0 : i32
    return %c0_i32, %c0_i32_0, %c0_i32_1 : i32, i32, i32
  }
  func.func @transform_3(%arg0: i32) -> (i32, i32, i32) {
    %c0_i32 = arith.constant 0 : i32
    %c0_i32_0 = arith.constant 0 : i32
    %c0_i32_1 = arith.constant 0 : i32
    %c0_i32_2 = arith.constant 0 : i32
    return %c0_i32, %c0_i32_0, %c0_i32_1 : i32, i32, i32
  }
  func.func @transform_4(%arg0: i32) -> (i32, i32, i32) {
    %c0_i32 = arith.constant 0 : i32
    %c0_i32_0 = arith.constant 0 : i32
    %c0_i32_1 = arith.constant 0 : i32
    %c0_i32_2 = arith.constant 0 : i32
    return %c0_i32, %c0_i32_0, %c0_i32_1 : i32, i32, i32
  }
  func.func @transform_5(%arg0: i32) -> (i32, i32) {
    %c0_i32 = arith.constant 0 : i32
    %c0_i32_0 = arith.constant 0 : i32
    return %arg0, %c0_i32 : i32, i32
  }
}

</mosaic_0001>

<llo_original>
// kernel: tpu_custom_call.1
$region0: #{tpu_custom_call.1}
  #allocation0 [shape = 'u32[]', space=smem, size = 0x4, offset = 0x4, fixed_abs, tag = 'smem constant byte address 0x4 - core index']
  #allocation1 [shape = 'u32[144,128]{1,0:T(1,128)}', space=vmem, size = 0x12000, scoped, tag = 'internal scratch']
  %s0 = inlined_call_operand.hbm [shape: f32[8,128], index: 0, kind: input, shape index: {}]
  %s1 = inlined_call_operand.hbm [shape: bf16[2,128,128], index: 1, kind: input, shape index: {}]
  %s2 = inlined_call_operand.vmem [shape: f32[2,1,128], index: 2, kind: input, shape index: {}]
  %s3 = inlined_call_operand.hbm [shape: bf16[2,128,128], index: 3, kind: input, shape index: {}]
  %s4 = inlined_call_operand.vmem [shape: f32[2,1,128], index: 4, kind: input, shape index: {}]
  %s5 = inlined_call_operand.hbm [shape: f32[8,128], index: 5, kind: output, shape index: {}]
  %s6 = sld [smem:[#allocation0]]
  $region42: #{tpu_custom_call.1} parent=0
    _
  %s8 = ssub.s32 1, %s6
  %s9 = scalar_select 0, %s8, %s6
  $region1: #{tpu_custom_call.1} parent=0
    #allocation2 [shape = 'u8[4096]{0}', space=vmem, size = 0x1000, scoped, tag = 'input window, operand 0, single buffered']
    #allocation3 [shape = 's32[1]{0}', space=sflag, size = 0x4, scoped, tag = 'scoped memory for tpu_custom_call.1']
    #allocation4 [shape = 's32[1]{0}', space=sflag, size = 0x4, scoped, tag = 'scoped memory for tpu_custom_call.1']
    #allocation5 [shape = 'u8[65536]{0}', space=vmem, size = 0x10000, scoped, tag = 'input window, operand 1, single buffered']
    #allocation6 [shape = 's32[1]{0}', space=sflag, size = 0x4, scoped, tag = 'scoped memory for tpu_custom_call.1']
    #allocation7 [shape = 'u8[65536]{0}', space=vmem, size = 0x10000, scoped, tag = 'input window, operand 3, single buffered']
    #allocation8 [shape = 'u8[4096]{0}', space=vmem, size = 0x1000, scoped, tag = 'output window, operand 0, single buffered']
    %10 = vsyncpa [#allocation3], 0
    %11 = vsyncpa [#allocation6], 0
    %12 = vsyncpa [#allocation4], 0
    // Predicated region
    $region2: #{tpu_custom_call.1} parent=1 // pred_check
      _
    $region3: #{tpu_custom_call.1} parent=1 // pred_check_branch
      %14 = sbr.rel (0) target = $region5
    $region4: #{tpu_custom_call.1} parent=1 // pred_region
      %s16 = ssub.s32 128, 128
      %17 = vsyncadd [#allocation3], %s16
      %s19 = sshll.u32 [#allocation2], 4
      %s20 = int_to_ptr.vmem [resolvable:$true] %s19
      %22 = dma.hbm_to_vmem [thread:$0]  %s0, 128, %s20, [#allocation3]
    $region5: #{tpu_custom_call.1} parent=1 // pred_fallthru
      _
    // Predicated region
    $region6: #{tpu_custom_call.1} parent=1 // pred_check
      _
    $region7: #{tpu_custom_call.1} parent=1 // pred_check_branch
      %24 = sbr.rel (0) target = $region9
    $region8: #{tpu_custom_call.1} parent=1 // pred_region
      %s26 = ssub.s32 2048, 2048
      %27 = vsyncadd [#allocation6], %s26
      %s28 = sshll.u32 [#allocation5], 4
      %s29 = int_to_ptr.vmem [resolvable:$true] %s28
      %34 = dma.hbm_to_vmem [thread:$0]  %s1, 2048, %s29, [#allocation6], 64, 64, 4
    $region9: #{tpu_custom_call.1} parent=1 // pred_fallthru
      _
    // Predicated region
    $region10: #{tpu_custom_call.1} parent=1 // pred_check
      _
    $region11: #{tpu_custom_call.1} parent=1 // pred_check_branch
      %36 = sbr.rel (0) target = $region13
    $region12: #{tpu_custom_call.1} parent=1 // pred_region
      _
    $region13: #{tpu_custom_call.1} parent=1 // pred_fallthru
      _
    // Predicated region
    $region14: #{tpu_custom_call.1} parent=1 // pred_check
      _
    $region15: #{tpu_custom_call.1} parent=1 // pred_check_branch
      %38 = sbr.rel (0) target = $region17
    $region16: #{tpu_custom_call.1} parent=1 // pred_region
      %s40 = ssub.s32 2048, 2048
      %41 = vsyncadd [#allocation6], %s40
      %s42 = sshll.u32 [#allocation7], 4
      %s43 = int_to_ptr.vmem [resolvable:$true] %s42
      %48 = dma.hbm_to_vmem [thread:$0]  %s3, 2048, %s43, [#allocation6], 64, 64, 4
    $region17: #{tpu_custom_call.1} parent=1 // pred_fallthru
      _
    // Predicated region
    $region18: #{tpu_custom_call.1} parent=1 // pred_check
      _
    $region19: #{tpu_custom_call.1} parent=1 // pred_check_branch
      %50 = sbr.rel (0) target = $region21
    $region20: #{tpu_custom_call.1} parent=1 // pred_region
      _
    $region21: #{tpu_custom_call.1} parent=1 // pred_fallthru
      _
    // Predicated region
    $region22: #{tpu_custom_call.1} parent=1 // pred_check
      _
    $region23: #{tpu_custom_call.1} parent=1 // pred_check_branch
      %52 = sbr.rel (0) target = $region25
    $region24: #{tpu_custom_call.1} parent=1 // pred_region
      %53 = dma.done [#allocation3], 128
    $region25: #{tpu_custom_call.1} parent=1 // pred_fallthru
      _
    // Predicated region
    $region26: #{tpu_custom_call.1} parent=1 // pred_check
      _
    $region27: #{tpu_custom_call.1} parent=1 // pred_check_branch
      %55 = sbr.rel (0) target = $region29
    $region28: #{tpu_custom_call.1} parent=1 // pred_region
      %56 = dma.done [#allocation6], 2048
    $region29: #{tpu_custom_call.1} parent=1 // pred_fallthru
      _
    // Predicated region
    $region30: #{tpu_custom_call.1} parent=1 // pred_check
      _
    $region31: #{tpu_custom_call.1} parent=1 // pred_check_branch
      %58 = sbr.rel (0) target = $region33
    $region32: #{tpu_custom_call.1} parent=1 // pred_region
      %59 = dma.done [#allocation6], 2048
    $region33: #{tpu_custom_call.1} parent=1 // pred_fallthru
      _
    %v61 = vld [vmem:[#allocation2] sm:$0xff]
    %v62 = vmax.f32 %v61, 0.0
    %v63 = vpack.c.bf16 %v62, %v62
    %v64 = vld [vmem:[#allocation5] sm:$0xf]
    %v65 = vld [vmem:[#allocation5 + $0x4] sm:$0xf]
    %v66 = vld [vmem:[#allocation5 + $0x8] sm:$0xf]
    %v67 = vld [vmem:[#allocation5 + $0xc] sm:$0xf]
    %v68 = vld [vmem:[#allocation5 + $0x10] sm:$0xf]
    %v69 = vld [vmem:[#allocation5 + $0x14] sm:$0xf]
    %v70 = vld [vmem:[#allocation5 + $0x18] sm:$0xf]
    %v71 = vld [vmem:[#allocation5 + $0x1c] sm:$0xf]
    %v72 = vld [vmem:[#allocation5 + $0x20] sm:$0xf]
    %v73 = vld [vmem:[#allocation5 + $0x24] sm:$0xf]
    %v74 = vld [vmem:[#allocation5 + $0x28] sm:$0xf]
    %v75 = vld [vmem:[#allocation5 + $0x2c] sm:$0xf]
    %v76 = vld [vmem:[#allocation5 + $0x30] sm:$0xf]
    %v77 = vld [vmem:[#allocation5 + $0x34] sm:$0xf]
    %v78 = vld [vmem:[#allocation5 + $0x38] sm:$0xf]
    %v79 = vld [vmem:[#allocation5 + $0x3c] sm:$0xf]
    %v80 = vld [vmem:[%s2] sm:$0x1]
    %v82 = vlaneseq
    %v83 = vshrl.u32 %v82, 7
    %v84 = vsub.s32 0, %v83
    %v85 = vrot.slane %v80, %v84
    %v103 = vunpack.c.l.b16 %v64
    %v104 = vunpack.c.l.b16 %v65
    %v105 = vunpack.c.l.b16 %v66
    %v106 = vunpack.c.l.b16 %v67
    %v107 = vunpack.c.l.b16 %v68
    %v108 = vunpack.c.l.b16 %v69
    %v109 = vunpack.c.l.b16 %v70
    %v110 = vunpack.c.l.b16 %v71
    %v111 = vunpack.c.l.b16 %v72
    %v112 = vunpack.c.l.b16 %v73
    %v113 = vunpack.c.l.b16 %v74
    %v114 = vunpack.c.l.b16 %v75
    %v115 = vunpack.c.l.b16 %v76
    %v116 = vunpack.c.l.b16 %v77
    %v117 = vunpack.c.l.b16 %v78
    %v118 = vunpack.c.l.b16 %v79
    %v119 = vpack.c.b16 %v104, %v103
    %v120 = vpack.c.b16 %v106, %v105
    %v121 = vpack.c.b16 %v108, %v107
    %v122 = vpack.c.b16 %v110, %v109
    %v123 = vpack.c.b16 %v112, %v111
    %v124 = vpack.c.b16 %v114, %v113
    %v125 = vpack.c.b16 %v116, %v115
    %v126 = vpack.c.b16 %v118, %v117
    %135 = vmatprep.subr.bf16.mxu0 0
    %136 = vmatpush1.bf16.msra.mxu0 %v119
    %137 = vmatprep.subr.bf16.mxu0 0
    %138 = vmatpush1.bf16.msra.mxu0 %v120
    %139 = vmatprep.subr.bf16.mxu0 0
    %140 = vmatpush1.bf16.msra.mxu0 %v121
    %141 = vmatprep.subr.bf16.mxu0 0
    %142 = vmatpush1.bf16.msra.mxu0 %v122
    %143 = vmatprep.subr.bf16.mxu0 0
    %144 = vmatpush1.bf16.msra.mxu0 %v123
    %145 = vmatprep.subr.bf16.mxu0 0
    %146 = vmatpush1.bf16.msra.mxu0 %v124
    %147 = vmatprep.subr.bf16.mxu0 0
    %148 = vmatpush1.bf16.msra.mxu0 %v125
    %149 = vmatprep.subr.bf16.mxu0 0
    %150 = vmatpush1.bf16.msra.mxu0 %v126
    %151 = vmatprep.subr.bf16.mxu0 0
    %152 = vmatpush1.bf16.msra.mxu0 0
    %153 = vmatprep.subr.bf16.mxu0 0
    %154 = vmatpush1.bf16.msra.mxu0 0
    %155 = vmatprep.subr.bf16.mxu0 0
    %156 = vmatpush1.bf16.msra.mxu0 0
    %157 = vmatprep.subr.bf16.mxu0 0
    %158 = vmatpush1.bf16.msra.mxu0 0
    %159 = vmatprep.subr.bf16.mxu0 0
    %160 = vmatpush1.bf16.msra.mxu0 0
    %161 = vmatprep.subr.bf16.mxu0 0
    %162 = vmatpush1.bf16.msra.mxu0 0
    %163 = vmatprep.subr.bf16.mxu0 0
    %164 = vmatpush1.bf16.msra.mxu0 0
    %165 = vmatprep.subr.bf16.mxu0 0
    %166 = vmatpush1.bf16.msra.mxu0 0
    %167 = vmatprep.mubr.bf16.mxu0 0
    %168 = vmatmul.mubr.bf16.gmra.mrb[0].mxu0 %v63
    %v169 = vpop.f32.mrb[0].mxu0
    %v170 = vadd.f32 %v85, %v169
    %v171 = vpop.f32.mrb[0].mxu0
    %v172 = vpop.f32.mrb[0].mxu0
    %v173 = vpop.f32.mrb[0].mxu0
    %174 = vdwg.mxu0
    %v175 = vmax.f32 %v170, 0.0
    %v176 = vpack.c.bf16 %v175, %v175
    %v177 = vld [vmem:[#allocation7] sm:$0xf]
    %v178 = vld [vmem:[#allocation7 + $0x4] sm:$0xf]
    %v179 = vld [vmem:[#allocation7 + $0x8] sm:$0xf]
    %v180 = vld [vmem:[#allocation7 + $0xc] sm:$0xf]
    %v181 = vld [vmem:[#allocation7 + $0x10] sm:$0xf]
    %v182 = vld [vmem:[#allocation7 + $0x14] sm:$0xf]
    %v183 = vld [vmem:[#allocation7 + $0x18] sm:$0xf]
    %v184 = vld [vmem:[#allocation7 + $0x1c] sm:$0xf]
    %v185 = vld [vmem:[#allocation7 + $0x20] sm:$0xf]
    %v186 = vld [vmem:[#allocation7 + $0x24] sm:$0xf]
    %v187 = vld [vmem:[#allocation7 + $0x28] sm:$0xf]
    %v188 = vld [vmem:[#allocation7 + $0x2c] sm:$0xf]
    %v189 = vld [vmem:[#allocation7 + $0x30] sm:$0xf]
    %v190 = vld [vmem:[#allocation7 + $0x34] sm:$0xf]
    %v191 = vld [vmem:[#allocation7 + $0x38] sm:$0xf]
    %v192 = vld [vmem:[#allocation7 + $0x3c] sm:$0xf]
    %v193 = vld [vmem:[%s4] sm:$0x1]
    %v195 = vlaneseq
    %v196 = vshrl.u32 %v195, 7
    %v197 = vsub.s32 0, %v196
    %v198 = vrot.slane %v193, %v197
    %v216 = vunpack.c.l.b16 %v177
    %v217 = vunpack.c.l.b16 %v178
    %v218 = vunpack.c.l.b16 %v179
    %v219 = vunpack.c.l.b16 %v180
    %v220 = vunpack.c.l.b16 %v181
    %v221 = vunpack.c.l.b16 %v182
    %v222 = vunpack.c.l.b16 %v183
    %v223 = vunpack.c.l.b16 %v184
    %v224 = vunpack.c.l.b16 %v185
    %v225 = vunpack.c.l.b16 %v186
    %v226 = vunpack.c.l.b16 %v187
    %v227 = vunpack.c.l.b16 %v188
    %v228 = vunpack.c.l.b16 %v189
    %v229 = vunpack.c.l.b16 %v190
    %v230 = vunpack.c.l.b16 %v191
    %v231 = vunpack.c.l.b16 %v192
    %v232 = vpack.c.b16 %v217, %v216
    %v233 = vpack.c.b16 %v219, %v218
    %v234 = vpack.c.b16 %v221, %v220
    %v235 = vpack.c.b16 %v223, %v222
    %v236 = vpack.c.b16 %v225, %v224
    %v237 = vpack.c.b16 %v227, %v226
    %v238 = vpack.c.b16 %v229, %v228
    %v239 = vpack.c.b16 %v231, %v230
    %248 = vmatprep.subr.bf16.mxu0 0
    %249 = vmatpush1.bf16.msra.mxu0 %v232
    %250 = vmatprep.subr.bf16.mxu0 0
    %251 = vmatpush1.bf16.msra.mxu0 %v233
    %252 = vmatprep.subr.bf16.mxu0 0
    %253 = vmatpush1.bf16.msra.mxu0 %v234
    %254 = vmatprep.subr.bf16.mxu0 0
    %255 = vmatpush1.bf16.msra.mxu0 %v235
    %256 = vmatprep.subr.bf16.mxu0 0
    %257 = vmatpush1.bf16.msra.mxu0 %v236
    %258 = vmatprep.subr.bf16.mxu0 0
    %259 = vmatpush1.bf16.msra.mxu0 %v237
    %260 = vmatprep.subr.bf16.mxu0 0
    %261 = vmatpush1.bf16.msra.mxu0 %v238
    %262 = vmatprep.subr.bf16.mxu0 0
    %263 = vmatpush1.bf16.msra.mxu0 %v239
    %264 = vmatprep.subr.bf16.mxu0 0
    %265 = vmatpush1.bf16.msra.mxu0 0
    %266 = vmatprep.subr.bf16.mxu0 0
    %267 = vmatpush1.bf16.msra.mxu0 0
    %268 = vmatprep.subr.bf16.mxu0 0
    %269 = vmatpush1.bf16.msra.mxu0 0
    %270 = vmatprep.subr.bf16.mxu0 0
    %271 = vmatpush1.bf16.msra.mxu0 0
    %272 = vmatprep.subr.bf16.mxu0 0
    %273 = vmatpush1.bf16.msra.mxu0 0
    %274 = vmatprep.subr.bf16.mxu0 0
    %275 = vmatpush1.bf16.msra.mxu0 0
    %276 = vmatprep.subr.bf16.mxu0 0
    %277 = vmatpush1.bf16.msra.mxu0 0
    %278 = vmatprep.subr.bf16.mxu0 0
    %279 = vmatpush1.bf16.msra.mxu0 0
    %280 = vmatprep.mubr.bf16.mxu0 0
    %281 = vmatmul.mubr.bf16.gmra.mrb[0].mxu0 %v176
    %v282 = vpop.f32.mrb[0].mxu0
    %v283 = vadd.f32 %v198, %v282
    %v284 = vpop.f32.mrb[0].mxu0
    %v285 = vpop.f32.mrb[0].mxu0
    %v286 = vpop.f32.mrb[0].mxu0
    %287 = vdwg.mxu0
    %v288 = vadd.f32 %v61, %v283
    %v289 = vmax.f32 %v288, 0.0
    %v290 = vpack.c.bf16 %v289, %v289
    %s291 = scalar_lea.vmem [#allocation5], 64
    %v292 = vld [vmem:[%s291] sm:$0xf]
    %v293 = vld [vmem:[%s291 + $0x4] sm:$0xf]
    %v294 = vld [vmem:[%s291 + $0x8] sm:$0xf]
    %v295 = vld [vmem:[%s291 + $0xc] sm:$0xf]
    %v296 = vld [vmem:[%s291 + $0x10] sm:$0xf]
    %v297 = vld [vmem:[%s291 + $0x14] sm:$0xf]
    %v298 = vld [vmem:[%s291 + $0x18] sm:$0xf]
    %v299 = vld [vmem:[%s291 + $0x1c] sm:$0xf]
    %v300 = vld [vmem:[%s291 + $0x20] sm:$0xf]
    %v301 = vld [vmem:[%s291 + $0x24] sm:$0xf]
    %v302 = vld [vmem:[%s291 + $0x28] sm:$0xf]
    %v303 = vld [vmem:[%s291 + $0x2c] sm:$0xf]
    %v304 = vld [vmem:[%s291 + $0x30] sm:$0xf]
    %v305 = vld [vmem:[%s291 + $0x34] sm:$0xf]
    %v306 = vld [vmem:[%s291 + $0x38] sm:$0xf]
    %v307 = vld [vmem:[%s291 + $0x3c] sm:$0xf]
    %s308 = scalar_lea.vmem %s2, 1
    %v309 = vld [vmem:[%s308] sm:$0x1]
    %v311 = vlaneseq
    %v312 = vshrl.u32 %v311, 7
    %v313 = vsub.s32 0, %v312
    %v314 = vrot.slane %v309, %v313
    %v332 = vunpack.c.l.b16 %v292
    %v333 = vunpack.c.l.b16 %v293
    %v334 = vunpack.c.l.b16 %v294
    %v335 = vunpack.c.l.b16 %v295
    %v336 = vunpack.c.l.b16 %v296
    %v337 = vunpack.c.l.b16 %v297
    %v338 = vunpack.c.l.b16 %v298
    %v339 = vunpack.c.l.b16 %v299
    %v340 = vunpack.c.l.b16 %v300
    %v341 = vunpack.c.l.b16 %v301
    %v342 = vunpack.c.l.b16 %v302
    %v343 = vunpack.c.l.b16 %v303
    %v344 = vunpack.c.l.b16 %v304
    %v345 = vunpack.c.l.b16 %v305
    %v346 = vunpack.c.l.b16 %v306
    %v347 = vunpack.c.l.b16 %v307
    %v348 = vpack.c.b16 %v333, %v332
    %v349 = vpack.c.b16 %v335, %v334
    %v350 = vpack.c.b16 %v337, %v336
    %v351 = vpack.c.b16 %v339, %v338
    %v352 = vpack.c.b16 %v341, %v340
    %v353 = vpack.c.b16 %v343, %v342
    %v354 = vpack.c.b16 %v345, %v344
    %v355 = vpack.c.b16 %v347, %v346
    %364 = vmatprep.subr.bf16.mxu0 0
    %365 = vmatpush1.bf16.msra.mxu0 %v348
    %366 = vmatprep.subr.bf16.mxu0 0
    %367 = vmatpush1.bf16.msra.mxu0 %v349
    %368 = vmatprep.subr.bf16.mxu0 0
    %369 = vmatpush1.bf16.msra.mxu0 %v350
    %370 = vmatprep.subr.bf16.mxu0 0
    %371 = vmatpush1.bf16.msra.mxu0 %v351
    %372 = vmatprep.subr.bf16.mxu0 0
    %373 = vmatpush1.bf16.msra.mxu0 %v352
    %374 = vmatprep.subr.bf16.mxu0 0
    %375 = vmatpush1.bf16.msra.mxu0 %v353
    %376 = vmatprep.subr.bf16.mxu0 0
    %377 = vmatpush1.bf16.msra.mxu0 %v354
    %378 = vmatprep.subr.bf16.mxu0 0
    %379 = vmatpush1.bf16.msra.mxu0 %v355
    %380 = vmatprep.subr.bf16.mxu0 0
    %381 = vmatpush1.bf16.msra.mxu0 0
    %382 = vmatprep.subr.bf16.mxu0 0
    %383 = vmatpush1.bf16.msra.mxu0 0
    %384 = vmatprep.subr.bf16.mxu0 0
    %385 = vmatpush1.bf16.msra.mxu0 0
    %386 = vmatprep.subr.bf16.mxu0 0
    %387 = vmatpush1.bf16.msra.mxu0 0
    %388 = vmatprep.subr.bf16.mxu0 0
    %389 = vmatpush1.bf16.msra.mxu0 0
    %390 = vmatprep.subr.bf16.mxu0 0
    %391 = vmatpush1.bf16.msra.mxu0 0
    %392 = vmatprep.subr.bf16.mxu0 0
    %393 = vmatpush1.bf16.msra.mxu0 0
    %394 = vmatprep.subr.bf16.mxu0 0
    %395 = vmatpush1.bf16.msra.mxu0 0
    %396 = vmatprep.mubr.bf16.mxu0 0
    %397 = vmatmul.mubr.bf16.gmra.mrb[0].mxu0 %v290
    %v398 = vpop.f32.mrb[0].mxu0
    %v399 = vadd.f32 %v314, %v398
    %v400 = vpop.f32.mrb[0].mxu0
    %v401 = vpop.f32.mrb[0].mxu0
    %v402 = vpop.f32.mrb[0].mxu0
    %403 = vdwg.mxu0
    %v404 = vmax.f32 %v399, 0.0
    %v405 = vpack.c.bf16 %v404, %v404
    %s406 = scalar_lea.vmem [#allocation7], 64
    %v407 = vld [vmem:[%s406] sm:$0xf]
    %v408 = vld [vmem:[%s406 + $0x4] sm:$0xf]
    %v409 = vld [vmem:[%s406 + $0x8] sm:$0xf]
    %v410 = vld [vmem:[%s406 + $0xc] sm:$0xf]
    %v411 = vld [vmem:[%s406 + $0x10] sm:$0xf]
    %v412 = vld [vmem:[%s406 + $0x14] sm:$0xf]
    %v413 = vld [vmem:[%s406 + $0x18] sm:$0xf]
    %v414 = vld [vmem:[%s406 + $0x1c] sm:$0xf]
    %v415 = vld [vmem:[%s406 + $0x20] sm:$0xf]
    %v416 = vld [vmem:[%s406 + $0x24] sm:$0xf]
    %v417 = vld [vmem:[%s406 + $0x28] sm:$0xf]
    %v418 = vld [vmem:[%s406 + $0x2c] sm:$0xf]
    %v419 = vld [vmem:[%s406 + $0x30] sm:$0xf]
    %v420 = vld [vmem:[%s406 + $0x34] sm:$0xf]
    %v421 = vld [vmem:[%s406 + $0x38] sm:$0xf]
    %v422 = vld [vmem:[%s406 + $0x3c] sm:$0xf]
    %s423 = scalar_lea.vmem %s4, 1
    %v424 = vld [vmem:[%s423] sm:$0x1]
    %v426 = vlaneseq
    %v427 = vshrl.u32 %v426, 7
    %v428 = vsub.s32 0, %v427
    %v429 = vrot.slane %v424, %v428
    %v447 = vunpack.c.l.b16 %v407
    %v448 = vunpack.c.l.b16 %v408
    %v449 = vunpack.c.l.b16 %v409
    %v450 = vunpack.c.l.b16 %v410
    %v451 = vunpack.c.l.b16 %v411
    %v452 = vunpack.c.l.b16 %v412
    %v453 = vunpack.c.l.b16 %v413
    %v454 = vunpack.c.l.b16 %v414
    %v455 = vunpack.c.l.b16 %v415
    %v456 = vunpack.c.l.b16 %v416
    %v457 = vunpack.c.l.b16 %v417
    %v458 = vunpack.c.l.b16 %v418
    %v459 = vunpack.c.l.b16 %v419
    %v460 = vunpack.c.l.b16 %v420
    %v461 = vunpack.c.l.b16 %v421
    %v462 = vunpack.c.l.b16 %v422
    %v463 = vpack.c.b16 %v448, %v447
    %v464 = vpack.c.b16 %v450, %v449
    %v465 = vpack.c.b16 %v452, %v451
    %v466 = vpack.c.b16 %v454, %v453
    %v467 = vpack.c.b16 %v456, %v455
    %v468 = vpack.c.b16 %v458, %v457
    %v469 = vpack.c.b16 %v460, %v459
    %v470 = vpack.c.b16 %v462, %v461
    %479 = vmatprep.subr.bf16.mxu0 0
    %480 = vmatpush1.bf16.msra.mxu0 %v463
    %481 = vmatprep.subr.bf16.mxu0 0
    %482 = vmatpush1.bf16.msra.mxu0 %v464
    %483 = vmatprep.subr.bf16.mxu0 0
    %484 = vmatpush1.bf16.msra.mxu0 %v465
    %485 = vmatprep.subr.bf16.mxu0 0
    %486 = vmatpush1.bf16.msra.mxu0 %v466
    %487 = vmatprep.subr.bf16.mxu0 0
    %488 = vmatpush1.bf16.msra.mxu0 %v467
    %489 = vmatprep.subr.bf16.mxu0 0
    %490 = vmatpush1.bf16.msra.mxu0 %v468
    %491 = vmatprep.subr.bf16.mxu0 0
    %492 = vmatpush1.bf16.msra.mxu0 %v469
    %493 = vmatprep.subr.bf16.mxu0 0
    %494 = vmatpush1.bf16.msra.mxu0 %v470
    %495 = vmatprep.subr.bf16.mxu0 0
    %496 = vmatpush1.bf16.msra.mxu0 0
    %497 = vmatprep.subr.bf16.mxu0 0
    %498 = vmatpush1.bf16.msra.mxu0 0
    %499 = vmatprep.subr.bf16.mxu0 0
    %500 = vmatpush1.bf16.msra.mxu0 0
    %501 = vmatprep.subr.bf16.mxu0 0
    %502 = vmatpush1.bf16.msra.mxu0 0
    %503 = vmatprep.subr.bf16.mxu0 0
    %504 = vmatpush1.bf16.msra.mxu0 0
    %505 = vmatprep.subr.bf16.mxu0 0
    %506 = vmatpush1.bf16.msra.mxu0 0
    %507 = vmatprep.subr.bf16.mxu0 0
    %508 = vmatpush1.bf16.msra.mxu0 0
    %509 = vmatprep.subr.bf16.mxu0 0
    %510 = vmatpush1.bf16.msra.mxu0 0
    %511 = vmatprep.mubr.bf16.mxu0 0
    %512 = vmatmul.mubr.bf16.gmra.mrb[0].mxu0 %v405
    %v513 = vpop.f32.mrb[0].mxu0
    %v514 = vadd.f32 %v429, %v513
    %v515 = vpop.f32.mrb[0].mxu0
    %v516 = vpop.f32.mrb[0].mxu0
    %v517 = vpop.f32.mrb[0].mxu0
    %518 = vdwg.mxu0
    %v519 = vadd.f32 %v288, %v514
    %520 = vst [vmem:[#allocation8] sm:$0xff] %v519
    // Predicated region
    $region34: #{tpu_custom_call.1} parent=1 // pred_check
      _
    $region35: #{tpu_custom_call.1} parent=1 // pred_check_branch
      %522 = sbr.rel (0) target = $region37
    $region36: #{tpu_custom_call.1} parent=1 // pred_region
      %s524 = ssub.s32 128, 128
      %525 = vsyncadd [#allocation4], %s524
      %s527 = sshll.u32 [#allocation8], 4
      %s528 = int_to_ptr.vmem [resolvable:$true] %s527
      %530 = dma.vmem_to_hbm [thread:$0]  %s528, 128, %s5, [#allocation4]
    $region37: #{tpu_custom_call.1} parent=1 // pred_fallthru
      _
    // Predicated region
    $region38: #{tpu_custom_call.1} parent=1 // pred_check
      _
    $region39: #{tpu_custom_call.1} parent=1 // pred_check_branch
      %532 = sbr.rel (0) target = $region41
    $region40: #{tpu_custom_call.1} parent=1 // pred_region
      %533 = dma.done [#allocation4], 128
    $region41: #{tpu_custom_call.1} parent=1 // pred_fallthru
      _
    %534 = vsyncpa [#allocation3], 1
    %535 = vsyncpa [#allocation6], 1
    %536 = vsyncpa [#allocation4], 1

</llo_original>
